<compile_context>
chip_gen: v7x
topology: tpu7x:2x2x1
jax: 0.10.0
libtpu: 0.0.40
codegen_flags: <defaults>
</compile_context>

<pallas_src>
import functools

import jax
import jax.numpy as jnp
from jax import lax
from jax.experimental import pallas as pl
from jax.experimental.pallas import tpu as pltpu


def _round_up(x, m):
    return (x + m - 1) // m * m


def _vmem_plan():
    """Chip-derived VMEM plan: (total vmem_limit_bytes, per-pipeline-buffer budget)."""
    try:
        cap = int(pltpu.get_tpu_info().vmem_capacity_bytes)
    except Exception:
        cap = 0
    if cap < (16 << 20):
        cap = 64 << 20  # conservative fallback: v7x physical per-TC VMEM
    # ~3/4 of physical, capped at 100 MiB: ~96 MiB on 128-MiB chips (v5e/v6e),
    # 48 MiB on v7x -- well above the scoped defaults on every generation.
    vmem_limit = min(cap * 3 // 4, 100 << 20)
    # x is double-buffered by the pipeline; keep ~1/3 of the plan as headroom
    # for the output buffers, w and the online-softmax scratch.
    per_buf = vmem_limit // 3
    return vmem_limit, per_buf


def _choose_tiles(B, S, D, itemsize, per_buf_budget):
    """Pick (batch_tile, seq_tile) so one (tb, ts, D) slab fills a pipeline buffer."""
    row_bytes = max(1, D * itemsize)
    # Sequence tile: whole sequence if a minimal 8-row batch slab fits one
    # buffer, else the largest multiple of 8 that does (online softmax across
    # the S-axis grid keeps this exact for any S).
    if 8 * S * row_bytes <= per_buf_budget:
        ts = S
    else:
        ts = max(8, (per_buf_budget // (8 * row_bytes)) // 8 * 8)
    # Batch tile: as large as one pipeline buffer allows ...
    tb_fit = max(8, (per_buf_budget // (ts * row_bytes)) // 8 * 8)
    # ... while keeping several batch tiles for DMA/compute overlap and an
    # even >= 2-way split of the "parallel" axis across v7x's two TensorCores.
    if B > 24:
        tb_split = _round_up(pl.cdiv(B, 4), 8)
    elif B > 8:
        tb_split = _round_up(pl.cdiv(B, 2), 8)
    else:
        tb_split = 8
    tb = max(8, min(tb_fit, tb_split, _round_up(B, 8)))
    return tb, ts


def _attention_kernel(x_ref, w_ref, o_ref, m_sc, l_sc, acc_sc, *,
                      seq_len, seq_tile, apply_mask):
    # x_ref: (tb, ts, D) slab   w_ref: (1, D)   o_ref: (tb, 1, D)
    # m_sc/l_sc: (tb, 1, 1) running max / denom, acc_sc: (tb, 1, D) accumulator
    si = pl.program_id(1)

    @pl.when(si == 0)
    def _init():
        m_sc[...] = jnp.full(m_sc.shape, -jnp.inf, m_sc.dtype)
        l_sc[...] = jnp.zeros(l_sc.shape, l_sc.dtype)
        acc_sc[...] = jnp.zeros(acc_sc.shape, acc_sc.dtype)

    w = w_ref[...]                                            # (1, D)

    valid = None
    if apply_mask:  # trace-time: only emitted when S % ts != 0
        pos = si * seq_tile + lax.broadcasted_iota(jnp.int32, (1, seq_tile, 1), 1)
        valid = pos < seq_len                                  # (1, ts, 1)

    # Pass 1: per-position scores (lane reduce over D), keepdims layout so the
    # softmax weights broadcast back over D with no relayout.  Bias omitted
    # (softmax over the sequence axis is shift-invariant).
    # TODO(synk): if a v6e/v7x bundle dump shows the XLU lane-reduce saturating
    # (D ~ 128-256), offload this reduction to the idle MXU via a padded dot.
    scores = jnp.sum(x_ref[...] * w, axis=-1, keepdims=True)  # (tb, ts, 1)
    if apply_mask:
        scores = jnp.where(valid, scores, -jnp.inf)

    # Online-softmax state update (exp lands on the free EUP slot).
    m_prev = m_sc[...]                                         # (tb, 1, 1)
    m_new = jnp.maximum(m_prev, jnp.max(scores, axis=1, keepdims=True))
    alpha = jnp.exp(m_prev - m_new)                            # (tb, 1, 1)
    p = jnp.exp(scores - m_new)                                # (tb, ts, 1)
    l_sc[...] = alpha * l_sc[...] + jnp.sum(p, axis=1, keepdims=True)
    m_sc[...] = m_new

    # Pass 2: weighted accumulation.  Re-read x_ref (instead of reusing the
    # pass-1 value) so the slab's live range stays bounded (no vreg spills).
    x2 = x_ref[...]
    if apply_mask:
        x2 = jnp.where(valid, x2, 0.0)
    acc_sc[...] = alpha * acc_sc[...] + jnp.sum(x2 * p, axis=1, keepdims=True)

    @pl.when(si == pl.num_programs(1) - 1)
    def _finalize():
        # Exact reciprocal: approx=True (~2^-12 rel err) risks the 1e-5 check
        # and the divide count here is negligible.
        inv = pl.reciprocal(l_sc[...], approx=False)           # (tb, 1, 1)
        o_ref[...] = (acc_sc[...] * inv).astype(o_ref.dtype)


def attention_module(x, w, b=None, *, seq_tile=None, batch_tile=None):
    """x: (B, S, D) f32, w: (1, D) = Linear(D,1).weight, b: (1,1) bias (unused:
    softmax over the sequence axis is shift-invariant).  Returns (B, D)."""
    del b
    B, S, D = x.shape
    itemsize = jnp.dtype(x.dtype).itemsize

    vmem_limit, per_buf = _vmem_plan()
    tb, ts = _choose_tiles(B, S, D, itemsize, per_buf)
    if seq_tile is not None:     # test/override hook; multiple of 8 or == S
        ts = int(seq_tile)
    if batch_tile is not None:   # test/override hook; multiple of 8
        tb = int(batch_tile)

    grid = (pl.cdiv(B, tb), pl.cdiv(S, ts))
    apply_mask = (S % ts) != 0

    kernel = functools.partial(
        _attention_kernel, seq_len=S, seq_tile=ts, apply_mask=apply_mask)

    out = pl.pallas_call(
        kernel,
        out_shape=jax.ShapeDtypeStruct((B, 1, D), x.dtype),
        grid_spec=pltpu.PrefetchScalarGridSpec(
            num_scalar_prefetch=0,
            grid=grid,
            in_specs=[
                pl.BlockSpec((tb, ts, D), lambda i, s: (i, s, 0)),
                pl.BlockSpec((1, D), lambda i, s: (0, 0)),
            ],
            out_specs=pl.BlockSpec((tb, 1, D), lambda i, s: (i, 0, 0)),
            scratch_shapes=[
                pltpu.VMEM((tb, 1, 1), jnp.float32),   # running max
                pltpu.VMEM((tb, 1, 1), jnp.float32),   # running denom
                pltpu.VMEM((tb, 1, D), jnp.float32),   # rescaled accumulator
            ],
        ),
        compiler_params=pltpu.CompilerParams(
            dimension_semantics=("parallel", "arbitrary"),
            vmem_limit_bytes=vmem_limit,
        ),
        cost_estimate=pl.CostEstimate(
            flops=4 * B * S * D,                       # score matvec + weighted sum
            transcendentals=B * S,                     # exp
            bytes_accessed=itemsize * (B * S * D + B * D + D),
        ),
    )(x, w)
    return out.reshape(B, D)


def reference(x, w, b):
    scores = jnp.einsum("bsd,kd->bsk", x, w) + b[0, 0]   # (B, S, 1)
    weights = jax.nn.softmax(scores, axis=1)
    return jnp.sum(x * weights, axis=1)                  # (B, D)


if __name__ == "__main__":
    hidden_size = 32
    B, S, D = 2, 8, hidden_size * 2   # D = hidden_size * 2, per nn.Linear(hidden*2, 1)

    key = jax.random.PRNGKey(0)
    kx, kw, kb, kx2 = jax.random.split(key, 4)

    x = jax.random.normal(kx, (B, S, D), dtype=jnp.float32)
    bound = 1.0 / (D ** 0.5)
    w = jax.random.uniform(kw, (1, D), dtype=jnp.float32, minval=-bound, maxval=bound)
    b = jax.random.uniform(kb, (1, 1), dtype=jnp.float32, minval=-bound, maxval=bound)

    out = jax.block_until_ready(attention_module(x, w, b))
    ref = reference(x, w, b)
    assert out.shape == (B, D)
    assert jnp.allclose(out, ref, atol=1e-5, rtol=1e-5), "mismatch vs reference"

    # Non-divisible batch + forced sequence tiling: exercises the online
    # softmax across S blocks, the masked sequence tail and the discarded
    # garbage batch-tail rows (review correctness concern).
    B2, S2 = 5, 13
    x2 = jax.random.normal(kx2, (B2, S2, D), dtype=jnp.float32)
    out2 = jax.block_until_ready(attention_module(x2, w, b, seq_tile=8))
    ref2 = reference(x2, w, b)
    assert out2.shape == (B2, D)
    assert jnp.allclose(out2, ref2, atol=1e-5, rtol=1e-5), "mismatch (tiled-S path)"

    print("KERNEL_OK")
</pallas_src>

<mosaic_0001>
module attributes {stable_mosaic.version = 11 : i64} {
  func.func @_attention_kernel(%arg0: i32, %arg1: i32, %arg2: memref<8x8x64xf32, #tpu.memory_space<vmem>>, %arg3: memref<1x64xf32, #tpu.memory_space<vmem>>, %arg4: memref<8x1x64xf32, #tpu.memory_space<vmem>>, %arg5: memref<8x1x1xf32, #tpu.memory_space<vmem>>, %arg6: memref<8x1x1xf32, #tpu.memory_space<vmem>>, %arg7: memref<8x1x64xf32, #tpu.memory_space<vmem>>) attributes {dimension_semantics = [#tpu.dimension_semantics<parallel>, #tpu.dimension_semantics<arbitrary>], iteration_bounds = array<i64: 1, 1>, scalar_prefetch = 0 : i64, scratch_operands = 3 : i64, tpu.core_type = #tpu.core_type<tc>, window_params = [{transform_indices = @transform_0, window_bounds = array<i64: 8, 8, 64>}, {pipeline_mode = #tpu.pipeline_mode<synchronous>, transform_indices = @transform_1, window_bounds = array<i64: 1, 64>}, {transform_indices = @transform_2, window_bounds = array<i64: 8, 1, 64>}]} {
    %c0_i32 = arith.constant 0 : i32
    %0 = arith.cmpi eq, %arg1, %c0_i32 : i32
    %1 = arith.extui %0 : i1 to i32
    %c0_i32_0 = arith.constant 0 : i32
    %2 = arith.cmpi ne, %1, %c0_i32_0 : i32
    scf.if %2 {
      %cst_31 = arith.constant 0xFF800000 : f32
      %39 = vector.broadcast %cst_31 : f32 to vector<8x1x1xf32>
      %c0_32 = arith.constant 0 : index
      %c0_33 = arith.constant 0 : index
      %c0_34 = arith.constant 0 : index
      %40 = vector.load %arg5[%c0_32, %c0_33, %c0_34] : memref<8x1x1xf32, #tpu.memory_space<vmem>>, vector<8x1x1xf32>
      tpu.vector_store %arg5[%c0_32, %c0_33, %c0_34], %39 {strides = array<i32>} : memref<8x1x1xf32, #tpu.memory_space<vmem>>, vector<8x1x1xf32>,
      %cst_35 = arith.constant 0.000000e+00 : f32
      %41 = vector.broadcast %cst_35 : f32 to vector<8x1x1xf32>
      %c0_36 = arith.constant 0 : index
      %c0_37 = arith.constant 0 : index
      %c0_38 = arith.constant 0 : index
      %42 = vector.load %arg6[%c0_36, %c0_37, %c0_38] : memref<8x1x1xf32, #tpu.memory_space<vmem>>, vector<8x1x1xf32>
      tpu.vector_store %arg6[%c0_36, %c0_37, %c0_38], %41 {strides = array<i32>} : memref<8x1x1xf32, #tpu.memory_space<vmem>>, vector<8x1x1xf32>,
      %cst_39 = arith.constant 0.000000e+00 : f32
      %43 = vector.broadcast %cst_39 : f32 to vector<8x1x64xf32>
      %c0_40 = arith.constant 0 : index
      %c0_41 = arith.constant 0 : index
      %c0_42 = arith.constant 0 : index
      %44 = vector.load %arg7[%c0_40, %c0_41, %c0_42] : memref<8x1x64xf32, #tpu.memory_space<vmem>>, vector<8x1x64xf32>
      tpu.vector_store %arg7[%c0_40, %c0_41, %c0_42], %43 {strides = array<i32>} : memref<8x1x64xf32, #tpu.memory_space<vmem>>, vector<8x1x64xf32>,
    } else {
    }
    %c0 = arith.constant 0 : index
    %c0_1 = arith.constant 0 : index
    %3 = vector.load %arg3[%c0, %c0_1] : memref<1x64xf32, #tpu.memory_space<vmem>>, vector<1x64xf32>
    %c0_2 = arith.constant 0 : index
    %c0_3 = arith.constant 0 : index
    %c0_4 = arith.constant 0 : index
    %4 = vector.load %arg2[%c0_2, %c0_3, %c0_4] : memref<8x8x64xf32, #tpu.memory_space<vmem>>, vector<8x8x64xf32>
    %5 = vector.shape_cast %3 : vector<1x64xf32> to vector<1x1x64xf32>
    %6 = vector.broadcast %5 : vector<1x1x64xf32> to vector<8x8x64xf32>
    %7 = arith.mulf %4, %6 : vector<8x8x64xf32>
    %cst = arith.constant dense<0.000000e+00> : vector<8x8xf32>
    %8 = vector.multi_reduction <add>, %7, %cst [2] : vector<8x8x64xf32> to vector<8x8xf32>
    %9 = vector.shape_cast %8 : vector<8x8xf32> to vector<8x8x1xf32>
    %c0_5 = arith.constant 0 : index
    %c0_6 = arith.constant 0 : index
    %c0_7 = arith.constant 0 : index
    %10 = vector.load %arg5[%c0_5, %c0_6, %c0_7] : memref<8x1x1xf32, #tpu.memory_space<vmem>>, vector<8x1x1xf32>
    %cst_8 = arith.constant dense<0xFF800000> : vector<8x1xf32>
    %11 = vector.multi_reduction <maximumf>, %9, %cst_8 [1] : vector<8x8x1xf32> to vector<8x1xf32>
    %12 = vector.shape_cast %11 : vector<8x1xf32> to vector<8x1x1xf32>
    %13 = arith.maximumf %10, %12 : vector<8x1x1xf32>
    %14 = arith.subf %10, %13 : vector<8x1x1xf32>
    %15 = math.exp %14 : vector<8x1x1xf32>
    %16 = vector.broadcast %13 : vector<8x1x1xf32> to vector<8x8x1xf32>
    %17 = arith.subf %9, %16 : vector<8x8x1xf32>
    %18 = math.exp %17 : vector<8x8x1xf32>
    %c0_9 = arith.constant 0 : index
    %c0_10 = arith.constant 0 : index
    %c0_11 = arith.constant 0 : index
    %19 = vector.load %arg6[%c0_9, %c0_10, %c0_11] : memref<8x1x1xf32, #tpu.memory_space<vmem>>, vector<8x1x1xf32>
    %20 = arith.mulf %15, %19 : vector<8x1x1xf32>
    %cst_12 = arith.constant dense<0.000000e+00> : vector<8x1xf32>
    %21 = vector.multi_reduction <add>, %18, %cst_12 [1] : vector<8x8x1xf32> to vector<8x1xf32>
    %22 = vector.shape_cast %21 : vector<8x1xf32> to vector<8x1x1xf32>
    %23 = arith.addf %20, %22 : vector<8x1x1xf32>
    %c0_13 = arith.constant 0 : index
    %c0_14 = arith.constant 0 : index
    %c0_15 = arith.constant 0 : index
    %24 = vector.load %arg6[%c0_13, %c0_14, %c0_15] : memref<8x1x1xf32, #tpu.memory_space<vmem>>, vector<8x1x1xf32>
    tpu.vector_store %arg6[%c0_13, %c0_14, %c0_15], %23 {strides = array<i32>} : memref<8x1x1xf32, #tpu.memory_space<vmem>>, vector<8x1x1xf32>,
    %c0_16 = arith.constant 0 : index
    %c0_17 = arith.constant 0 : index
    %c0_18 = arith.constant 0 : index
    %25 = vector.load %arg5[%c0_16, %c0_17, %c0_18] : memref<8x1x1xf32, #tpu.memory_space<vmem>>, vector<8x1x1xf32>
    tpu.vector_store %arg5[%c0_16, %c0_17, %c0_18], %13 {strides = array<i32>} : memref<8x1x1xf32, #tpu.memory_space<vmem>>, vector<8x1x1xf32>,
    %c0_19 = arith.constant 0 : index
    %c0_20 = arith.constant 0 : index
    %c0_21 = arith.constant 0 : index
    %26 = vector.load %arg2[%c0_19, %c0_20, %c0_21] : memref<8x8x64xf32, #tpu.memory_space<vmem>>, vector<8x8x64xf32>
    %c0_22 = arith.constant 0 : index
    %c0_23 = arith.constant 0 : index
    %c0_24 = arith.constant 0 : index
    %27 = vector.load %arg7[%c0_22, %c0_23, %c0_24] : memref<8x1x64xf32, #tpu.memory_space<vmem>>, vector<8x1x64xf32>
    %28 = vector.broadcast %15 : vector<8x1x1xf32> to vector<8x1x64xf32>
    %29 = arith.mulf %28, %27 : vector<8x1x64xf32>
    %30 = vector.broadcast %18 : vector<8x8x1xf32> to vector<8x8x64xf32>
    %31 = arith.mulf %26, %30 : vector<8x8x64xf32>
    %cst_25 = arith.constant dense<0.000000e+00> : vector<8x64xf32>
    %32 = vector.multi_reduction <add>, %31, %cst_25 [1] : vector<8x8x64xf32> to vector<8x64xf32>
    %33 = vector.shape_cast %32 : vector<8x64xf32> to vector<8x1x64xf32>
    %34 = arith.addf %29, %33 : vector<8x1x64xf32>
    %c0_26 = arith.constant 0 : index
    %c0_27 = arith.constant 0 : index
    %c0_28 = arith.constant 0 : index
    %35 = vector.load %arg7[%c0_26, %c0_27, %c0_28] : memref<8x1x64xf32, #tpu.memory_space<vmem>>, vector<8x1x64xf32>
    tpu.vector_store %arg7[%c0_26, %c0_27, %c0_28], %34 {strides = array<i32>} : memref<8x1x64xf32, #tpu.memory_space<vmem>>, vector<8x1x64xf32>,
    %c0_i32_29 = arith.constant 0 : i32
    %36 = arith.cmpi eq, %arg1, %c0_i32_29 : i32
    %37 = arith.extui %36 : i1 to i32
    %c0_i32_30 = arith.constant 0 : i32
    %38 = arith.cmpi ne, %37, %c0_i32_30 : i32
    scf.if %38 {
      %c0_31 = arith.constant 0 : index
      %c0_32 = arith.constant 0 : index
      %c0_33 = arith.constant 0 : index
      %39 = vector.load %arg6[%c0_31, %c0_32, %c0_33] : memref<8x1x1xf32, #tpu.memory_space<vmem>>, vector<8x1x1xf32>
      %40 = tpu.reciprocal %39 : vector<8x1x1xf32> -> vector<8x1x1xf32>
      %c0_34 = arith.constant 0 : index
      %c0_35 = arith.constant 0 : index
      %c0_36 = arith.constant 0 : index
      %41 = vector.load %arg7[%c0_34, %c0_35, %c0_36] : memref<8x1x64xf32, #tpu.memory_space<vmem>>, vector<8x1x64xf32>
      %42 = vector.broadcast %40 : vector<8x1x1xf32> to vector<8x1x64xf32>
      %43 = arith.mulf %41, %42 : vector<8x1x64xf32>
      %c0_37 = arith.constant 0 : index
      %c0_38 = arith.constant 0 : index
      %c0_39 = arith.constant 0 : index
      %44 = vector.load %arg4[%c0_37, %c0_38, %c0_39] : memref<8x1x64xf32, #tpu.memory_space<vmem>>, vector<8x1x64xf32>
      tpu.vector_store %arg4[%c0_37, %c0_38, %c0_39], %43 {strides = array<i32>} : memref<8x1x64xf32, #tpu.memory_space<vmem>>, vector<8x1x64xf32>,
    } else {
    }
    return
  }
  func.func @transform_0(%arg0: i32, %arg1: i32) -> (i32, i32, i32) {
    %c0_i32 = arith.constant 0 : i32
    %c0_i32_0 = arith.constant 0 : i32
    return %arg0, %arg1, %c0_i32 : i32, i32, i32
  }
  func.func @transform_1(%arg0: i32, %arg1: i32) -> (i32, i32) {
    %c0_i32 = arith.constant 0 : i32
    %c0_i32_0 = arith.constant 0 : i32
    %c0_i32_1 = arith.constant 0 : i32
    return %c0_i32, %c0_i32_0 : i32, i32
  }
  func.func @transform_2(%arg0: i32, %arg1: i32) -> (i32, i32, i32) {
    %c0_i32 = arith.constant 0 : i32
    %c0_i32_0 = arith.constant 0 : i32
    %c0_i32_1 = arith.constant 0 : i32
    return %arg0, %c0_i32, %c0_i32_0 : i32, i32, i32
  }
}

</mosaic_0001>

<llo_original>
// kernel: tpu_custom_call.1
$region0: #{tpu_custom_call.1}
  #allocation0 [shape = 'u32[]', space=smem, size = 0x4, offset = 0x4, fixed_abs, tag = 'smem constant byte address 0x4 - core index']
  #allocation1 [shape = 'u32[144,128]{1,0:T(1,128)}', space=vmem, size = 0x12000, scoped, tag = 'internal scratch']
  #allocation2 [shape = 'f32[8,1,1]{2,1,0:T(1,128)}', space=vmem, size = 0x1000, scoped, tag = 'scratch operand']
  #allocation3 [shape = 'f32[8,1,1]{2,1,0:T(1,128)}', space=vmem, size = 0x1000, scoped, tag = 'scratch operand']
  #allocation4 [shape = 'f32[8,1,64]{2,1,0:T(1,128)}', space=vmem, size = 0x1000, scoped, tag = 'scratch operand']
  %s0 = inlined_call_operand.hbm [shape: f32[2,8,64], index: 0, kind: input, shape index: {}]
  %s1 = inlined_call_operand.vmem [shape: f32[1,64], index: 1, kind: input, shape index: {}]
  %s2 = inlined_call_operand.hbm [shape: f32[2,1,64], index: 2, kind: output, shape index: {}]
  %s3 = sld [smem:[#allocation0]]
  $region30: #{tpu_custom_call.1} parent=0
    _
  %s5 = ssub.s32 1, %s3
  %s6 = scalar_select 0, %s5, %s3
  $region1: #{tpu_custom_call.1} parent=0
    #allocation5 [shape = 'u8[32768]{0}', space=vmem, size = 0x8000, scoped, tag = 'input window, operand 0, single buffered']
    #allocation6 [shape = 's32[1]{0}', space=sflag, size = 0x4, scoped, tag = 'scoped memory for tpu_custom_call.1']
    #allocation7 [shape = 's32[1]{0}', space=sflag, size = 0x4, scoped, tag = 'scoped memory for tpu_custom_call.1']
    #allocation8 [shape = 'u8[4096]{0}', space=vmem, size = 0x1000, scoped, tag = 'output window, operand 0, single buffered']
    %7 = vsyncpa [#allocation6], 0
    %8 = vsyncpa [#allocation7], 0
    // Predicated region
    $region2: #{tpu_custom_call.1} parent=1 // pred_check
      _
    $region3: #{tpu_custom_call.1} parent=1 // pred_check_branch
      %10 = sbr.rel (0) target = $region5
    $region4: #{tpu_custom_call.1} parent=1 // pred_region
      %s12 = ssub.s32 1024, 256
      %13 = vsyncadd [#allocation6], %s12
      %s14 = sshll.u32 [#allocation5], 4
      %s15 = int_to_ptr.vmem [resolvable:$true] %s14
      %20 = dma.hbm_to_vmem [thread:$0]  %s0, 256, %s15, [#allocation6], 128, 128, 8
    $region5: #{tpu_custom_call.1} parent=1 // pred_fallthru
      _
    // Predicated region
    $region6: #{tpu_custom_call.1} parent=1 // pred_check
      _
    $region7: #{tpu_custom_call.1} parent=1 // pred_check_branch
      %22 = sbr.rel (0) target = $region9
    $region8: #{tpu_custom_call.1} parent=1 // pred_region
      _
    $region9: #{tpu_custom_call.1} parent=1 // pred_fallthru
      _
    // Predicated region
    $region10: #{tpu_custom_call.1} parent=1 // pred_check
      _
    $region11: #{tpu_custom_call.1} parent=1 // pred_check_branch
      %24 = sbr.rel (0) target = $region13
    $region12: #{tpu_custom_call.1} parent=1 // pred_region
      %25 = dma.done [#allocation6], 1024
    $region13: #{tpu_custom_call.1} parent=1 // pred_fallthru
      _
    %p26 = scmp.eq.s32.totalorder 0, 0
    // Predicated region
    $region14: #{tpu_custom_call.1} parent=1 // pred_check
      %p27 = pneg %p26
    $region15: #{tpu_custom_call.1} parent=1 // pred_check_branch
      %29 = sbr.rel (%p27) target = $region17
    $region16: #{tpu_custom_call.1} parent=1 // pred_region
      %vm30 = vcmask 0
      %31 = vst.msk [vmem:[#allocation2] sm:$0x1] %vm30, -inf
      %32 = vst.msk [vmem:[#allocation2 + $0x1] sm:$0x1] %vm30, -inf
      %33 = vst.msk [vmem:[#allocation2 + $0x2] sm:$0x1] %vm30, -inf
      %34 = vst.msk [vmem:[#allocation2 + $0x3] sm:$0x1] %vm30, -inf
      %35 = vst.msk [vmem:[#allocation2 + $0x4] sm:$0x1] %vm30, -inf
      %36 = vst.msk [vmem:[#allocation2 + $0x5] sm:$0x1] %vm30, -inf
      %37 = vst.msk [vmem:[#allocation2 + $0x6] sm:$0x1] %vm30, -inf
      %38 = vst.msk [vmem:[#allocation2 + $0x7] sm:$0x1] %vm30, -inf
      %39 = vst.msk [vmem:[#allocation3] sm:$0x1] %vm30, 0.0
      %40 = vst.msk [vmem:[#allocation3 + $0x1] sm:$0x1] %vm30, 0.0
      %41 = vst.msk [vmem:[#allocation3 + $0x2] sm:$0x1] %vm30, 0.0
      %42 = vst.msk [vmem:[#allocation3 + $0x3] sm:$0x1] %vm30, 0.0
      %43 = vst.msk [vmem:[#allocation3 + $0x4] sm:$0x1] %vm30, 0.0
      %44 = vst.msk [vmem:[#allocation3 + $0x5] sm:$0x1] %vm30, 0.0
      %45 = vst.msk [vmem:[#allocation3 + $0x6] sm:$0x1] %vm30, 0.0
      %46 = vst.msk [vmem:[#allocation3 + $0x7] sm:$0x1] %vm30, 0.0
      %vm47 = vcmask 516096
      %48 = vst.msk [vmem:[#allocation4] sm:$0x1] %vm47, 0.0
      %49 = vst.msk [vmem:[#allocation4 + $0x1] sm:$0x1] %vm47, 0.0
      %50 = vst.msk [vmem:[#allocation4 + $0x2] sm:$0x1] %vm47, 0.0
      %51 = vst.msk [vmem:[#allocation4 + $0x3] sm:$0x1] %vm47, 0.0
      %52 = vst.msk [vmem:[#allocation4 + $0x4] sm:$0x1] %vm47, 0.0
      %53 = vst.msk [vmem:[#allocation4 + $0x5] sm:$0x1] %vm47, 0.0
      %54 = vst.msk [vmem:[#allocation4 + $0x6] sm:$0x1] %vm47, 0.0
      %55 = vst.msk [vmem:[#allocation4 + $0x7] sm:$0x1] %vm47, 0.0
    $region17: #{tpu_custom_call.1} parent=1 // pred_fallthru
      _
    %v56 = vld [vmem:[%s1] sm:$0x1]
    %v57 = vld [vmem:[#allocation5] sm:$0xff]
    %v58 = vld [vmem:[#allocation5 + $0x8] sm:$0xff]
    %v59 = vld [vmem:[#allocation5 + $0x10] sm:$0xff]
    %v60 = vld [vmem:[#allocation5 + $0x18] sm:$0xff]
    %v61 = vld [vmem:[#allocation5 + $0x20] sm:$0xff]
    %v62 = vld [vmem:[#allocation5 + $0x28] sm:$0xff]
    %v63 = vld [vmem:[#allocation5 + $0x30] sm:$0xff]
    %v64 = vld [vmem:[#allocation5 + $0x38] sm:$0xff]
    %v66 = vlaneseq
    %v67 = vshrl.u32 %v66, 7
    %v68 = vsub.s32 0, %v67
    %v69 = vrot.slane %v56, %v68
    %v71 = vmul.f32 %v57, %v69
    %v72 = vmul.f32 %v58, %v69
    %v73 = vmul.f32 %v59, %v69
    %v74 = vmul.f32 %v60, %v69
    %v75 = vmul.f32 %v61, %v69
    %v76 = vmul.f32 %v62, %v69
    %v77 = vmul.f32 %v63, %v69
    %v78 = vmul.f32 %v64, %v69
    %vm79 = vcmask 523264
    %v80 = vsel %vm79, %v71, 0.0
    %81 = vadd.xlane.f32.xlu0 %v80
    %v82 = vpop.xlane.xlu0 %81
    %v83 = vsel %vm79, %v72, 0.0
    %84 = vadd.xlane.f32.xlu0 %v83
    %v85 = vpop.xlane.xlu0 %84
    %v86 = vsel %vm79, %v73, 0.0
    %87 = vadd.xlane.f32.xlu0 %v86
    %v88 = vpop.xlane.xlu0 %87
    %v89 = vsel %vm79, %v74, 0.0
    %90 = vadd.xlane.f32.xlu0 %v89
    %v91 = vpop.xlane.xlu0 %90
    %v92 = vsel %vm79, %v75, 0.0
    %93 = vadd.xlane.f32.xlu0 %v92
    %v94 = vpop.xlane.xlu0 %93
    %v95 = vsel %vm79, %v76, 0.0
    %96 = vadd.xlane.f32.xlu0 %v95
    %v97 = vpop.xlane.xlu0 %96
    %v98 = vsel %vm79, %v77, 0.0
    %99 = vadd.xlane.f32.xlu0 %v98
    %v100 = vpop.xlane.xlu0 %99
    %v101 = vsel %vm79, %v78, 0.0
    %102 = vadd.xlane.f32.xlu0 %v101
    %v103 = vpop.xlane.xlu0 %102
    %v104 = vld [vmem:[#allocation2] sm:$0x1]
    %v105 = vld [vmem:[#allocation2 + $0x1] sm:$0x1]
    %v106 = vld [vmem:[#allocation2 + $0x2] sm:$0x1]
    %v107 = vld [vmem:[#allocation2 + $0x3] sm:$0x1]
    %v108 = vld [vmem:[#allocation2 + $0x4] sm:$0x1]
    %v109 = vld [vmem:[#allocation2 + $0x5] sm:$0x1]
    %v110 = vld [vmem:[#allocation2 + $0x6] sm:$0x1]
    %v111 = vld [vmem:[#allocation2 + $0x7] sm:$0x1]
    %v112 = vrot.slane %v82, 4
    %v113 = vmax.f32 %v82, %v112
    %v114 = vrot.slane %v113, 2
    %v115 = vmax.f32 %v113, %v114
    %v116 = vrot.slane %v115, 1
    %v117 = vmax.f32 %v115, %v116
    %v118 = vrot.slane %v85, 4
    %v119 = vmax.f32 %v85, %v118
    %v120 = vrot.slane %v119, 2
    %v121 = vmax.f32 %v119, %v120
    %v122 = vrot.slane %v121, 1
    %v123 = vmax.f32 %v121, %v122
    %v124 = vrot.slane %v88, 4
    %v125 = vmax.f32 %v88, %v124
    %v126 = vrot.slane %v125, 2
    %v127 = vmax.f32 %v125, %v126
    %v128 = vrot.slane %v127, 1
    %v129 = vmax.f32 %v127, %v128
    %v130 = vrot.slane %v91, 4
    %v131 = vmax.f32 %v91, %v130
    %v132 = vrot.slane %v131, 2
    %v133 = vmax.f32 %v131, %v132
    %v134 = vrot.slane %v133, 1
    %v135 = vmax.f32 %v133, %v134
    %v136 = vrot.slane %v94, 4
    %v137 = vmax.f32 %v94, %v136
    %v138 = vrot.slane %v137, 2
    %v139 = vmax.f32 %v137, %v138
    %v140 = vrot.slane %v139, 1
    %v141 = vmax.f32 %v139, %v140
    %v142 = vrot.slane %v97, 4
    %v143 = vmax.f32 %v97, %v142
    %v144 = vrot.slane %v143, 2
    %v145 = vmax.f32 %v143, %v144
    %v146 = vrot.slane %v145, 1
    %v147 = vmax.f32 %v145, %v146
    %v148 = vrot.slane %v100, 4
    %v149 = vmax.f32 %v100, %v148
    %v150 = vrot.slane %v149, 2
    %v151 = vmax.f32 %v149, %v150
    %v152 = vrot.slane %v151, 1
    %v153 = vmax.f32 %v151, %v152
    %v154 = vrot.slane %v103, 4
    %v155 = vmax.f32 %v103, %v154
    %v156 = vrot.slane %v155, 2
    %v157 = vmax.f32 %v155, %v156
    %v158 = vrot.slane %v157, 1
    %v159 = vmax.f32 %v157, %v158
    %v160 = vmax.f32 %v104, %v117
    %v161 = vmax.f32 %v105, %v123
    %v162 = vmax.f32 %v106, %v129
    %v163 = vmax.f32 %v107, %v135
    %v164 = vmax.f32 %v108, %v141
    %v165 = vmax.f32 %v109, %v147
    %v166 = vmax.f32 %v110, %v153
    %v167 = vmax.f32 %v111, %v159
    %v168 = vsub.f32 %v104, %v160
    %v169 = vsub.f32 %v105, %v161
    %v170 = vsub.f32 %v106, %v162
    %v171 = vsub.f32 %v107, %v163
    %v172 = vsub.f32 %v108, %v164
    %v173 = vsub.f32 %v109, %v165
    %v174 = vsub.f32 %v110, %v166
    %v175 = vsub.f32 %v111, %v167
    %v176 = vmul.f32 %v168, 1.442695
    %v177 = vpow.pop %v176
    %v178 = vmul.f32 %v169, 1.442695
    %v179 = vpow.pop %v178
    %v180 = vmul.f32 %v170, 1.442695
    %v181 = vpow.pop %v180
    %v182 = vmul.f32 %v171, 1.442695
    %v183 = vpow.pop %v182
    %v184 = vmul.f32 %v172, 1.442695
    %v185 = vpow.pop %v184
    %v186 = vmul.f32 %v173, 1.442695
    %v187 = vpow.pop %v186
    %v188 = vmul.f32 %v174, 1.442695
    %v189 = vpow.pop %v188
    %v190 = vmul.f32 %v175, 1.442695
    %v191 = vpow.pop %v190
    %v200 = vlaneseq
    %v201 = vshrl.u32 %v200, 7
    %v202 = vsub.s32 0, %v201
    %v203 = vrot.slane %v160, %v202
    %v204 = vlaneseq
    %v205 = vshrl.u32 %v204, 7
    %v206 = vsub.s32 0, %v205
    %v207 = vrot.slane %v161, %v206
    %v208 = vlaneseq
    %v209 = vshrl.u32 %v208, 7
    %v210 = vsub.s32 0, %v209
    %v211 = vrot.slane %v162, %v210
    %v212 = vlaneseq
    %v213 = vshrl.u32 %v212, 7
    %v214 = vsub.s32 0, %v213
    %v215 = vrot.slane %v163, %v214
    %v216 = vlaneseq
    %v217 = vshrl.u32 %v216, 7
    %v218 = vsub.s32 0, %v217
    %v219 = vrot.slane %v164, %v218
    %v220 = vlaneseq
    %v221 = vshrl.u32 %v220, 7
    %v222 = vsub.s32 0, %v221
    %v223 = vrot.slane %v165, %v222
    %v224 = vlaneseq
    %v225 = vshrl.u32 %v224, 7
    %v226 = vsub.s32 0, %v225
    %v227 = vrot.slane %v166, %v226
    %v228 = vlaneseq
    %v229 = vshrl.u32 %v228, 7
    %v230 = vsub.s32 0, %v229
    %v231 = vrot.slane %v167, %v230
    %v240 = vsub.f32 %v82, %v203
    %v241 = vsub.f32 %v85, %v207
    %v242 = vsub.f32 %v88, %v211
    %v243 = vsub.f32 %v91, %v215
    %v244 = vsub.f32 %v94, %v219
    %v245 = vsub.f32 %v97, %v223
    %v246 = vsub.f32 %v100, %v227
    %v247 = vsub.f32 %v103, %v231
    %v248 = vmul.f32 %v240, 1.442695
    %v249 = vpow.pop %v248
    %v250 = vmul.f32 %v241, 1.442695
    %v251 = vpow.pop %v250
    %v252 = vmul.f32 %v242, 1.442695
    %v253 = vpow.pop %v252
    %v254 = vmul.f32 %v243, 1.442695
    %v255 = vpow.pop %v254
    %v256 = vmul.f32 %v244, 1.442695
    %v257 = vpow.pop %v256
    %v258 = vmul.f32 %v245, 1.442695
    %v259 = vpow.pop %v258
    %v260 = vmul.f32 %v246, 1.442695
    %v261 = vpow.pop %v260
    %v262 = vmul.f32 %v247, 1.442695
    %v263 = vpow.pop %v262
    %v264 = vld [vmem:[#allocation3] sm:$0x1]
    %v265 = vld [vmem:[#allocation3 + $0x1] sm:$0x1]
    %v266 = vld [vmem:[#allocation3 + $0x2] sm:$0x1]
    %v267 = vld [vmem:[#allocation3 + $0x3] sm:$0x1]
    %v268 = vld [vmem:[#allocation3 + $0x4] sm:$0x1]
    %v269 = vld [vmem:[#allocation3 + $0x5] sm:$0x1]
    %v270 = vld [vmem:[#allocation3 + $0x6] sm:$0x1]
    %v271 = vld [vmem:[#allocation3 + $0x7] sm:$0x1]
    %v272 = vmul.f32 %v177, %v264
    %v273 = vmul.f32 %v179, %v265
    %v274 = vmul.f32 %v181, %v266
    %v275 = vmul.f32 %v183, %v267
    %v276 = vmul.f32 %v185, %v268
    %v277 = vmul.f32 %v187, %v269
    %v278 = vmul.f32 %v189, %v270
    %v279 = vmul.f32 %v191, %v271
    %vm280 = vcmask 7168
    %v281 = vsel %vm280, %v249, 0.0
    %v282 = vrot.slane %v281, 4
    %v283 = vadd.f32 %v281, %v282
    %v284 = vrot.slane %v283, 2
    %v285 = vadd.f32 %v283, %v284
    %v286 = vrot.slane %v285, 1
    %v287 = vadd.f32 %v285, %v286
    %v288 = vsel %vm280, %v251, 0.0
    %v289 = vrot.slane %v288, 4
    %v290 = vadd.f32 %v288, %v289
    %v291 = vrot.slane %v290, 2
    %v292 = vadd.f32 %v290, %v291
    %v293 = vrot.slane %v292, 1
    %v294 = vadd.f32 %v292, %v293
    %v295 = vsel %vm280, %v253, 0.0
    %v296 = vrot.slane %v295, 4
    %v297 = vadd.f32 %v295, %v296
    %v298 = vrot.slane %v297, 2
    %v299 = vadd.f32 %v297, %v298
    %v300 = vrot.slane %v299, 1
    %v301 = vadd.f32 %v299, %v300
    %v302 = vsel %vm280, %v255, 0.0
    %v303 = vrot.slane %v302, 4
    %v304 = vadd.f32 %v302, %v303
    %v305 = vrot.slane %v304, 2
    %v306 = vadd.f32 %v304, %v305
    %v307 = vrot.slane %v306, 1
    %v308 = vadd.f32 %v306, %v307
    %v309 = vsel %vm280, %v257, 0.0
    %v310 = vrot.slane %v309, 4
    %v311 = vadd.f32 %v309, %v310
    %v312 = vrot.slane %v311, 2
    %v313 = vadd.f32 %v311, %v312
    %v314 = vrot.slane %v313, 1
    %v315 = vadd.f32 %v313, %v314
    %v316 = vsel %vm280, %v259, 0.0
    %v317 = vrot.slane %v316, 4
    %v318 = vadd.f32 %v316, %v317
    %v319 = vrot.slane %v318, 2
    %v320 = vadd.f32 %v318, %v319
    %v321 = vrot.slane %v320, 1
    %v322 = vadd.f32 %v320, %v321
    %v323 = vsel %vm280, %v261, 0.0
    %v324 = vrot.slane %v323, 4
    %v325 = vadd.f32 %v323, %v324
    %v326 = vrot.slane %v325, 2
    %v327 = vadd.f32 %v325, %v326
    %v328 = vrot.slane %v327, 1
    %v329 = vadd.f32 %v327, %v328
    %v330 = vsel %vm280, %v263, 0.0
    %v331 = vrot.slane %v330, 4
    %v332 = vadd.f32 %v330, %v331
    %v333 = vrot.slane %v332, 2
    %v334 = vadd.f32 %v332, %v333
    %v335 = vrot.slane %v334, 1
    %v336 = vadd.f32 %v334, %v335
    %v337 = vadd.f32 %v272, %v287
    %v338 = vadd.f32 %v273, %v294
    %v339 = vadd.f32 %v274, %v301
    %v340 = vadd.f32 %v275, %v308
    %v341 = vadd.f32 %v276, %v315
    %v342 = vadd.f32 %v277, %v322
    %v343 = vadd.f32 %v278, %v329
    %v344 = vadd.f32 %v279, %v336
    %vm345 = vcmask 0
    %346 = vst.msk [vmem:[#allocation3] sm:$0x1] %vm345, %v337
    %347 = vst.msk [vmem:[#allocation3 + $0x1] sm:$0x1] %vm345, %v338
    %348 = vst.msk [vmem:[#allocation3 + $0x2] sm:$0x1] %vm345, %v339
    %349 = vst.msk [vmem:[#allocation3 + $0x3] sm:$0x1] %vm345, %v340
    %350 = vst.msk [vmem:[#allocation3 + $0x4] sm:$0x1] %vm345, %v341
    %351 = vst.msk [vmem:[#allocation3 + $0x5] sm:$0x1] %vm345, %v342
    %352 = vst.msk [vmem:[#allocation3 + $0x6] sm:$0x1] %vm345, %v343
    %353 = vst.msk [vmem:[#allocation3 + $0x7] sm:$0x1] %vm345, %v344
    %354 = vst.msk [vmem:[#allocation2] sm:$0x1] %vm345, %v160
    %355 = vst.msk [vmem:[#allocation2 + $0x1] sm:$0x1] %vm345, %v161
    %356 = vst.msk [vmem:[#allocation2 + $0x2] sm:$0x1] %vm345, %v162
    %357 = vst.msk [vmem:[#allocation2 + $0x3] sm:$0x1] %vm345, %v163
    %358 = vst.msk [vmem:[#allocation2 + $0x4] sm:$0x1] %vm345, %v164
    %359 = vst.msk [vmem:[#allocation2 + $0x5] sm:$0x1] %vm345, %v165
    %360 = vst.msk [vmem:[#allocation2 + $0x6] sm:$0x1] %vm345, %v166
    %361 = vst.msk [vmem:[#allocation2 + $0x7] sm:$0x1] %vm345, %v167
    %v362 = vld [vmem:[#allocation5] sm:$0xff]
    %v363 = vld [vmem:[#allocation5 + $0x8] sm:$0xff]
    %v364 = vld [vmem:[#allocation5 + $0x10] sm:$0xff]
    %v365 = vld [vmem:[#allocation5 + $0x18] sm:$0xff]
    %v366 = vld [vmem:[#allocation5 + $0x20] sm:$0xff]
    %v367 = vld [vmem:[#allocation5 + $0x28] sm:$0xff]
    %v368 = vld [vmem:[#allocation5 + $0x30] sm:$0xff]
    %v369 = vld [vmem:[#allocation5 + $0x38] sm:$0xff]
    %v370 = vld [vmem:[#allocation4] sm:$0x1]
    %v371 = vld [vmem:[#allocation4 + $0x1] sm:$0x1]
    %v372 = vld [vmem:[#allocation4 + $0x2] sm:$0x1]
    %v373 = vld [vmem:[#allocation4 + $0x3] sm:$0x1]
    %v374 = vld [vmem:[#allocation4 + $0x4] sm:$0x1]
    %v375 = vld [vmem:[#allocation4 + $0x5] sm:$0x1]
    %v376 = vld [vmem:[#allocation4 + $0x6] sm:$0x1]
    %v377 = vld [vmem:[#allocation4 + $0x7] sm:$0x1]
    %379 = vset.pattern.permute.xlu0 0
    %380 = vperm.xlu0 %379, %v177
    %v381 = vpop.permute.xlu0 %380
    %v383 = vlaneseq
    %v384 = vshrl.u32 %v383, 7
    %v385 = vsub.s32 0, %v384
    %v386 = vrot.slane %v381, %v385
    %388 = vset.pattern.permute.xlu0 0
    %389 = vperm.xlu0 %388, %v179
    %v390 = vpop.permute.xlu0 %389
    %v392 = vlaneseq
    %v393 = vshrl.u32 %v392, 7
    %v394 = vsub.s32 0, %v393
    %v395 = vrot.slane %v390, %v394
    %397 = vset.pattern.permute.xlu0 0
    %398 = vperm.xlu0 %397, %v181
    %v399 = vpop.permute.xlu0 %398
    %v401 = vlaneseq
    %v402 = vshrl.u32 %v401, 7
    %v403 = vsub.s32 0, %v402
    %v404 = vrot.slane %v399, %v403
    %406 = vset.pattern.permute.xlu0 0
    %407 = vperm.xlu0 %406, %v183
    %v408 = vpop.permute.xlu0 %407
    %v410 = vlaneseq
    %v411 = vshrl.u32 %v410, 7
    %v412 = vsub.s32 0, %v411
    %v413 = vrot.slane %v408, %v412
    %415 = vset.pattern.permute.xlu0 0
    %416 = vperm.xlu0 %415, %v185
    %v417 = vpop.permute.xlu0 %416
    %v419 = vlaneseq
    %v420 = vshrl.u32 %v419, 7
    %v421 = vsub.s32 0, %v420
    %v422 = vrot.slane %v417, %v421
    %424 = vset.pattern.permute.xlu0 0
    %425 = vperm.xlu0 %424, %v187
    %v426 = vpop.permute.xlu0 %425
    %v428 = vlaneseq
    %v429 = vshrl.u32 %v428, 7
    %v430 = vsub.s32 0, %v429
    %v431 = vrot.slane %v426, %v430
    %433 = vset.pattern.permute.xlu0 0
    %434 = vperm.xlu0 %433, %v189
    %v435 = vpop.permute.xlu0 %434
    %v437 = vlaneseq
    %v438 = vshrl.u32 %v437, 7
    %v439 = vsub.s32 0, %v438
    %v440 = vrot.slane %v435, %v439
    %442 = vset.pattern.permute.xlu0 0
    %443 = vperm.xlu0 %442, %v191
    %v444 = vpop.permute.xlu0 %443
    %v446 = vlaneseq
    %v447 = vshrl.u32 %v446, 7
    %v448 = vsub.s32 0, %v447
    %v449 = vrot.slane %v444, %v448
    %v450 = vmul.f32 %v386, %v370
    %v451 = vmul.f32 %v395, %v371
    %v452 = vmul.f32 %v404, %v372
    %v453 = vmul.f32 %v413, %v373
    %v454 = vmul.f32 %v422, %v374
    %v455 = vmul.f32 %v431, %v375
    %v456 = vmul.f32 %v440, %v376
    %v457 = vmul.f32 %v449, %v377
    %459 = vset.pattern.permute.xlu0 0
    %460 = vperm.xlu0 %459, %v249
    %v461 = vpop.permute.xlu0 %460
    %464 = vset.pattern.permute.xlu0 0
    %465 = vperm.xlu0 %464, %v251
    %v466 = vpop.permute.xlu0 %465
    %469 = vset.pattern.permute.xlu0 0
    %470 = vperm.xlu0 %469, %v253
    %v471 = vpop.permute.xlu0 %470
    %474 = vset.pattern.permute.xlu0 0
    %475 = vperm.xlu0 %474, %v255
    %v476 = vpop.permute.xlu0 %475
    %479 = vset.pattern.permute.xlu0 0
    %480 = vperm.xlu0 %479, %v257
    %v481 = vpop.permute.xlu0 %480
    %484 = vset.pattern.permute.xlu0 0
    %485 = vperm.xlu0 %484, %v259
    %v486 = vpop.permute.xlu0 %485
    %489 = vset.pattern.permute.xlu0 0
    %490 = vperm.xlu0 %489, %v261
    %v491 = vpop.permute.xlu0 %490
    %494 = vset.pattern.permute.xlu0 0
    %495 = vperm.xlu0 %494, %v263
    %v496 = vpop.permute.xlu0 %495
    %v498 = vmul.f32 %v362, %v461
    %v499 = vmul.f32 %v363, %v466
    %v500 = vmul.f32 %v364, %v471
    %v501 = vmul.f32 %v365, %v476
    %v502 = vmul.f32 %v366, %v481
    %v503 = vmul.f32 %v367, %v486
    %v504 = vmul.f32 %v368, %v491
    %v505 = vmul.f32 %v369, %v496
    %v506 = vsel %vm79, %v498, 0.0
    %v507 = vrot.slane %v506, 4
    %v508 = vadd.f32 %v506, %v507
    %v509 = vrot.slane %v508, 2
    %v510 = vadd.f32 %v508, %v509
    %v511 = vrot.slane %v510, 1
    %v512 = vadd.f32 %v510, %v511
    %v513 = vsel %vm79, %v499, 0.0
    %v514 = vrot.slane %v513, 4
    %v515 = vadd.f32 %v513, %v514
    %v516 = vrot.slane %v515, 2
    %v517 = vadd.f32 %v515, %v516
    %v518 = vrot.slane %v517, 1
    %v519 = vadd.f32 %v517, %v518
    %v520 = vsel %vm79, %v500, 0.0
    %v521 = vrot.slane %v520, 4
    %v522 = vadd.f32 %v520, %v521
    %v523 = vrot.slane %v522, 2
    %v524 = vadd.f32 %v522, %v523
    %v525 = vrot.slane %v524, 1
    %v526 = vadd.f32 %v524, %v525
    %v527 = vsel %vm79, %v501, 0.0
    %v528 = vrot.slane %v527, 4
    %v529 = vadd.f32 %v527, %v528
    %v530 = vrot.slane %v529, 2
    %v531 = vadd.f32 %v529, %v530
    %v532 = vrot.slane %v531, 1
    %v533 = vadd.f32 %v531, %v532
    %v534 = vsel %vm79, %v502, 0.0
    %v535 = vrot.slane %v534, 4
    %v536 = vadd.f32 %v534, %v535
    %v537 = vrot.slane %v536, 2
    %v538 = vadd.f32 %v536, %v537
    %v539 = vrot.slane %v538, 1
    %v540 = vadd.f32 %v538, %v539
    %v541 = vsel %vm79, %v503, 0.0
    %v542 = vrot.slane %v541, 4
    %v543 = vadd.f32 %v541, %v542
    %v544 = vrot.slane %v543, 2
    %v545 = vadd.f32 %v543, %v544
    %v546 = vrot.slane %v545, 1
    %v547 = vadd.f32 %v545, %v546
    %v548 = vsel %vm79, %v504, 0.0
    %v549 = vrot.slane %v548, 4
    %v550 = vadd.f32 %v548, %v549
    %v551 = vrot.slane %v550, 2
    %v552 = vadd.f32 %v550, %v551
    %v553 = vrot.slane %v552, 1
    %v554 = vadd.f32 %v552, %v553
    %v555 = vsel %vm79, %v505, 0.0
    %v556 = vrot.slane %v555, 4
    %v557 = vadd.f32 %v555, %v556
    %v558 = vrot.slane %v557, 2
    %v559 = vadd.f32 %v557, %v558
    %v560 = vrot.slane %v559, 1
    %v561 = vadd.f32 %v559, %v560
    %v562 = vadd.f32 %v450, %v512
    %v563 = vadd.f32 %v451, %v519
    %v564 = vadd.f32 %v452, %v526
    %v565 = vadd.f32 %v453, %v533
    %v566 = vadd.f32 %v454, %v540
    %v567 = vadd.f32 %v455, %v547
    %v568 = vadd.f32 %v456, %v554
    %v569 = vadd.f32 %v457, %v561
    %vm570 = vcmask 516096
    %571 = vst.msk [vmem:[#allocation4] sm:$0x1] %vm570, %v562
    %572 = vst.msk [vmem:[#allocation4 + $0x1] sm:$0x1] %vm570, %v563
    %573 = vst.msk [vmem:[#allocation4 + $0x2] sm:$0x1] %vm570, %v564
    %574 = vst.msk [vmem:[#allocation4 + $0x3] sm:$0x1] %vm570, %v565
    %575 = vst.msk [vmem:[#allocation4 + $0x4] sm:$0x1] %vm570, %v566
    %576 = vst.msk [vmem:[#allocation4 + $0x5] sm:$0x1] %vm570, %v567
    %577 = vst.msk [vmem:[#allocation4 + $0x6] sm:$0x1] %vm570, %v568
    %578 = vst.msk [vmem:[#allocation4 + $0x7] sm:$0x1] %vm570, %v569
    // Predicated region
    $region18: #{tpu_custom_call.1} parent=1 // pred_check
      %p579 = pneg %p26
    $region19: #{tpu_custom_call.1} parent=1 // pred_check_branch
      %581 = sbr.rel (%p579) target = $region21
    $region20: #{tpu_custom_call.1} parent=1 // pred_region
      %v582 = vld [vmem:[#allocation3] sm:$0x1]
      %v583 = vld [vmem:[#allocation3 + $0x1] sm:$0x1]
      %v584 = vld [vmem:[#allocation3 + $0x2] sm:$0x1]
      %v585 = vld [vmem:[#allocation3 + $0x3] sm:$0x1]
      %v586 = vld [vmem:[#allocation3 + $0x4] sm:$0x1]
      %v587 = vld [vmem:[#allocation3 + $0x5] sm:$0x1]
      %v588 = vld [vmem:[#allocation3 + $0x6] sm:$0x1]
      %v589 = vld [vmem:[#allocation3 + $0x7] sm:$0x1]
      %v590 = vrcp.pop %v582
      %v591 = vrcp.pop %v583
      %v592 = vrcp.pop %v584
      %v593 = vrcp.pop %v585
      %v594 = vrcp.pop %v586
      %v595 = vrcp.pop %v587
      %v596 = vrcp.pop %v588
      %v597 = vrcp.pop %v589
      %v598 = vld [vmem:[#allocation4] sm:$0x1]
      %v599 = vld [vmem:[#allocation4 + $0x1] sm:$0x1]
      %v600 = vld [vmem:[#allocation4 + $0x2] sm:$0x1]
      %v601 = vld [vmem:[#allocation4 + $0x3] sm:$0x1]
      %v602 = vld [vmem:[#allocation4 + $0x4] sm:$0x1]
      %v603 = vld [vmem:[#allocation4 + $0x5] sm:$0x1]
      %v604 = vld [vmem:[#allocation4 + $0x6] sm:$0x1]
      %v605 = vld [vmem:[#allocation4 + $0x7] sm:$0x1]
      %607 = vset.pattern.permute.xlu0 0
      %608 = vperm.xlu0 %607, %v590
      %v609 = vpop.permute.xlu0 %608
      %v611 = vlaneseq
      %v612 = vshrl.u32 %v611, 7
      %v613 = vsub.s32 0, %v612
      %v614 = vrot.slane %v609, %v613
      %616 = vset.pattern.permute.xlu0 0
      %617 = vperm.xlu0 %616, %v591
      %v618 = vpop.permute.xlu0 %617
      %v620 = vlaneseq
      %v621 = vshrl.u32 %v620, 7
      %v622 = vsub.s32 0, %v621
      %v623 = vrot.slane %v618, %v622
      %625 = vset.pattern.permute.xlu0 0
      %626 = vperm.xlu0 %625, %v592
      %v627 = vpop.permute.xlu0 %626
      %v629 = vlaneseq
      %v630 = vshrl.u32 %v629, 7
      %v631 = vsub.s32 0, %v630
      %v632 = vrot.slane %v627, %v631
      %634 = vset.pattern.permute.xlu0 0
      %635 = vperm.xlu0 %634, %v593
      %v636 = vpop.permute.xlu0 %635
      %v638 = vlaneseq
      %v639 = vshrl.u32 %v638, 7
      %v640 = vsub.s32 0, %v639
      %v641 = vrot.slane %v636, %v640
      %643 = vset.pattern.permute.xlu0 0
      %644 = vperm.xlu0 %643, %v594
      %v645 = vpop.permute.xlu0 %644
      %v647 = vlaneseq
      %v648 = vshrl.u32 %v647, 7
      %v649 = vsub.s32 0, %v648
      %v650 = vrot.slane %v645, %v649
      %652 = vset.pattern.permute.xlu0 0
      %653 = vperm.xlu0 %652, %v595
      %v654 = vpop.permute.xlu0 %653
      %v656 = vlaneseq
      %v657 = vshrl.u32 %v656, 7
      %v658 = vsub.s32 0, %v657
      %v659 = vrot.slane %v654, %v658
      %661 = vset.pattern.permute.xlu0 0
      %662 = vperm.xlu0 %661, %v596
      %v663 = vpop.permute.xlu0 %662
      %v665 = vlaneseq
      %v666 = vshrl.u32 %v665, 7
      %v667 = vsub.s32 0, %v666
      %v668 = vrot.slane %v663, %v667
      %670 = vset.pattern.permute.xlu0 0
      %671 = vperm.xlu0 %670, %v597
      %v672 = vpop.permute.xlu0 %671
      %v674 = vlaneseq
      %v675 = vshrl.u32 %v674, 7
      %v676 = vsub.s32 0, %v675
      %v677 = vrot.slane %v672, %v676
      %v678 = vmul.f32 %v598, %v614
      %v679 = vmul.f32 %v599, %v623
      %v680 = vmul.f32 %v600, %v632
      %v681 = vmul.f32 %v601, %v641
      %v682 = vmul.f32 %v602, %v650
      %v683 = vmul.f32 %v603, %v659
      %v684 = vmul.f32 %v604, %v668
      %v685 = vmul.f32 %v605, %v677
      %686 = vst.msk [vmem:[#allocation8] sm:$0x1] %vm570, %v678
      %687 = vst.msk [vmem:[#allocation8 + $0x1] sm:$0x1] %vm570, %v679
      %688 = vst.msk [vmem:[#allocation8 + $0x2] sm:$0x1] %vm570, %v680
      %689 = vst.msk [vmem:[#allocation8 + $0x3] sm:$0x1] %vm570, %v681
      %690 = vst.msk [vmem:[#allocation8 + $0x4] sm:$0x1] %vm570, %v682
      %691 = vst.msk [vmem:[#allocation8 + $0x5] sm:$0x1] %vm570, %v683
      %692 = vst.msk [vmem:[#allocation8 + $0x6] sm:$0x1] %vm570, %v684
      %693 = vst.msk [vmem:[#allocation8 + $0x7] sm:$0x1] %vm570, %v685
    $region21: #{tpu_custom_call.1} parent=1 // pred_fallthru
      _
    // Predicated region
    $region22: #{tpu_custom_call.1} parent=1 // pred_check
      _
    $region23: #{tpu_custom_call.1} parent=1 // pred_check_branch
      %695 = sbr.rel (0) target = $region25
    $region24: #{tpu_custom_call.1} parent=1 // pred_region
      %s697 = ssub.s32 128, 32
      %698 = vsyncadd [#allocation7], %s697
      %s699 = sshll.u32 [#allocation8], 4
      %s700 = int_to_ptr.vmem [resolvable:$true] %s699
      %705 = dma.vmem_to_hbm [thread:$0]  %s700, 32, %s2, [#allocation7], 16, 16, 1
    $region25: #{tpu_custom_call.1} parent=1 // pred_fallthru
      _
    // Predicated region
    $region26: #{tpu_custom_call.1} parent=1 // pred_check
      _
    $region27: #{tpu_custom_call.1} parent=1 // pred_check_branch
      %707 = sbr.rel (0) target = $region29
    $region28: #{tpu_custom_call.1} parent=1 // pred_region
      %708 = dma.done [#allocation7], 128
    $region29: #{tpu_custom_call.1} parent=1 // pred_fallthru
      _
    %709 = vsyncpa [#allocation6], 1
    %710 = vsyncpa [#allocation7], 1

</llo_original>
